<compile_context>
chip_gen: v7x
topology: tpu7x:2x2x1
jax: 0.10.0
libtpu: 0.0.40
codegen_flags: <defaults>
</compile_context>

<pallas_src>
import math

import jax
import jax.numpy as jnp
from jax.experimental import pallas as pl
from jax.experimental.pallas import tpu as pltpu


def _round_up(x: int, m: int) -> int:
    return ((x + m - 1) // m) * m


def _pad2d(x, rows, cols):
    r, c = x.shape
    if r == rows and c == cols:
        return x
    return jnp.pad(x, ((0, rows - r), (0, cols - c)))


def _pick_tile(dim: int, max_tile: int, align: int) -> int:
    """Largest multiple of `align` that divides `dim` and is <= max_tile.

    `dim` is already a multiple of `align`, so `align` is a valid fallback.
    Picking exact divisors means we never have to pad beyond hardware
    alignment (avoids materializing a padded copy of large operands).
    """
    if dim <= max_tile:
        return dim
    t = (max_tile // align) * align
    while t > align:
        if dim % t == 0:
            return t
        t -= align
    return align


def _matmul_kernel(a_ref, b_ref, o_ref, acc_ref):
    @pl.when(pl.program_id(2) == 0)
    def _():
        acc_ref[...] = jnp.zeros_like(acc_ref)

    acc_ref[...] += jnp.dot(a_ref[...], b_ref[...],
                            preferred_element_type=jnp.float32)

    @pl.when(pl.program_id(2) == pl.num_programs(2) - 1)
    def _():
        o_ref[...] = acc_ref[...].astype(o_ref.dtype)


def _matmul_bias_kernel(a_ref, b_ref, bias_ref, o_ref, acc_ref):
    @pl.when(pl.program_id(2) == 0)
    def _():
        acc_ref[...] = jnp.zeros_like(acc_ref)

    acc_ref[...] += jnp.dot(a_ref[...], b_ref[...],
                            preferred_element_type=jnp.float32)

    @pl.when(pl.program_id(2) == pl.num_programs(2) - 1)
    def _():
        # Bias added exactly once, in fp32, only in the finalize step.
        o_ref[...] = (acc_ref[...] + bias_ref[...]).astype(o_ref.dtype)


def _tiled_matmul(a, b, bias=None, *, out_dtype=None, mxu_dtype=None,
                  max_tm=512, max_tk=2048, max_tn=1024,
                  m_align=8, min_i_tiles=2, trim_output=True):
    """Tiled (M,K)@(K,N) [+ bias] on TPU with fp32 accumulation.

    Operands are cast to `mxu_dtype` (e.g. bf16) for the MXU and padded only
    to hardware alignment (m -> m_align, k/n -> 128); tiles are exact
    divisors of the aligned dims.  `b` may already be K-padded to a multiple
    of 128 (zero rows), which lets a producer kernel hand over a pre-padded
    tensor with no extra copy.
    """
    m, k = a.shape
    k_b, n = b.shape
    out_dtype = out_dtype or a.dtype
    a_dtype = mxu_dtype or a.dtype
    b_dtype = mxu_dtype or b.dtype

    m_p = _round_up(m, m_align)
    k_p = _round_up(max(k, k_b), 128)
    n_p = _round_up(n, 128)
    assert _round_up(k, 128) == k_p and _round_up(k_b, 128) == k_p, (a.shape, b.shape)

    # Tile selection.
    #  tn: cover all of n_p when it fits -> j grid = 1, A streamed exactly once.
    #  tk: as large as the cap allows (fewer k steps, longer MXU bursts).
    #  tm: large, but capped so the i axis keeps >= min_i_tiles tiles when
    #      possible (megacore sharding on v7x).
    tn = _pick_tile(n_p, max_tn, 128)
    tk = _pick_tile(k_p, max_tk, 128)
    tm_cap = max_tm
    if min_i_tiles > 1:
        tm_cap = min(tm_cap, max(m_align, m_p // min_i_tiles))
    tm = _pick_tile(m_p, tm_cap, m_align)

    # Pad only to alignment (no-op / no copy when already aligned, e.g. adj
    # with N a multiple of 128).  Zero-padding of K contributes 0 to the sum.
    a_p = _pad2d(a.astype(a_dtype), m_p, k_p)
    b_p = _pad2d(b.astype(b_dtype), k_p, n_p)

    grid = (m_p // tm, n_p // tn, k_p // tk)
    in_specs = [
        pl.BlockSpec((tm, tk), lambda i, j, kk: (i, kk)),
        pl.BlockSpec((tk, tn), lambda i, j, kk: (kk, j)),
    ]
    operands = [a_p, b_p]
    kernel = _matmul_kernel
    if bias is not None:
        bias_p = _pad2d(bias.reshape(1, -1).astype(jnp.float32), 1, n_p)
        in_specs.append(pl.BlockSpec((1, tn), lambda i, j, kk: (0, j)))
        operands.append(bias_p)
        kernel = _matmul_bias_kernel

    a_item = jnp.dtype(a_dtype).itemsize
    b_item = jnp.dtype(b_dtype).itemsize
    o_item = jnp.dtype(out_dtype).itemsize

    # Double-buffered inputs/outputs + fp32 accumulator; cap at 48 MiB so the
    # budget is safe on v7x (64 MiB physical) and comfortable on v5e/v6e.
    vmem_bytes = (2 * tm * tk * a_item + 2 * tk * tn * b_item
                  + 2 * tm * tn * o_item + tm * tn * 4)
    if bias is not None:
        vmem_bytes += 2 * tn * 4
    vmem_limit = int(min(48 * 1024 * 1024,
                         max(32 * 1024 * 1024, (vmem_bytes * 3) // 2)))

    # Model tile re-reads: A is read once per j tile, B once per i tile.
    cost = pl.CostEstimate(
        flops=2 * m_p * k_p * n_p + (m_p * n_p if bias is not None else 0),
        transcendentals=0,
        bytes_accessed=(m_p * k_p * a_item * (n_p // tn)
                        + k_p * n_p * b_item * (m_p // tm)
                        + m_p * n_p * o_item),
    )

    out_p = pl.pallas_call(
        kernel,
        out_shape=jax.ShapeDtypeStruct((m_p, n_p), out_dtype),
        grid_spec=pltpu.PrefetchScalarGridSpec(
            num_scalar_prefetch=0,
            grid=grid,
            in_specs=in_specs,
            out_specs=pl.BlockSpec((tm, tn), lambda i, j, kk: (i, j)),
            scratch_shapes=[pltpu.VMEM((tm, tn), jnp.float32)],
        ),
        compiler_params=pltpu.CompilerParams(
            dimension_semantics=("parallel", "parallel", "arbitrary"),
            vmem_limit_bytes=vmem_limit,
        ),
        cost_estimate=cost,
    )(*operands)

    if trim_output and (m_p, n_p) != (m, n):
        out_p = out_p[:m, :n]
    return out_p


def graph_convolution(x, adj, weight, bias=None, *, mxu_dtype=jnp.bfloat16):
    """x: [N, F_in], adj: [N, N], weight: [F_in, F_out], bias: [F_out] or None."""
    n_nodes, _ = x.shape
    f_out = weight.shape[1]
    support_dtype = mxu_dtype or jnp.float32

    # Stage 1: support = X @ W, computed once (hoisted out of the adj stream).
    # Emitted in bf16, rows padded to a multiple of 128, so stage 2 consumes
    # it directly as its K operand with no extra pad/copy or fp32 round-trip.
    support_p = _tiled_matmul(
        x, weight,
        out_dtype=support_dtype, mxu_dtype=mxu_dtype,
        m_align=128, trim_output=False)

    # Stage 2: output = adj @ support (+ bias) -- the dominant 2*N^2*F_out
    # FLOPs and the dominant HBM stream (adj).  adj goes to the MXU in bf16
    # with fp32 accumulation; tn covers all of F_out so adj is read once.
    out_p = _tiled_matmul(
        adj, support_p, bias=bias,
        out_dtype=x.dtype, mxu_dtype=mxu_dtype,
        m_align=8, trim_output=False)

    return out_p[:n_nodes, :f_out]


graph_convolution_jit = jax.jit(graph_convolution)


def graph_convolution_ref(x, adj, weight, bias, mxu_dtype=None):
    """Pure-JAX reference; mxu_dtype mimics the kernel's bf16 MXU numerics."""
    f32 = jnp.float32
    hi = jax.lax.Precision.HIGHEST
    if mxu_dtype is not None:
        xc = x.astype(mxu_dtype).astype(f32)
        wc = weight.astype(mxu_dtype).astype(f32)
        adjc = adj.astype(mxu_dtype).astype(f32)
        support = jnp.dot(xc, wc, precision=hi).astype(mxu_dtype).astype(f32)
        out = jnp.dot(adjc, support, precision=hi)
    else:
        out = jnp.dot(adj, jnp.dot(x, weight, precision=hi), precision=hi)
    if bias is not None:
        out = out + bias[None, :]
    return out.astype(x.dtype)


def _make_inputs(key, n, f_in, f_out):
    k_x, k_adj, k_w, k_b = jax.random.split(key, 4)
    x = jax.random.normal(k_x, (n, f_in), dtype=jnp.float32)

    # Symmetric row-normalized dense adjacency, deterministic.
    a = (jax.random.uniform(k_adj, (n, n)) > 0.8).astype(jnp.float32)
    a = a + a.T + jnp.eye(n, dtype=jnp.float32)
    a = jnp.minimum(a, 1.0)
    adj = a / jnp.sum(a, axis=1, keepdims=True)

    # Parameter init mirroring reset_parameters(): U(-stdv, stdv), stdv=1/sqrt(F_out).
    stdv = 1.0 / math.sqrt(f_out)
    weight = jax.random.uniform(k_w, (f_in, f_out), minval=-stdv, maxval=stdv,
                                dtype=jnp.float32)
    bias = jax.random.uniform(k_b, (f_out,), minval=-stdv, maxval=stdv,
                              dtype=jnp.float32)
    return x, adj, weight, bias


if __name__ == "__main__":
    key = jax.random.PRNGKey(0)
    k1, k2 = jax.random.split(key)

    # Primary test: small shapes (single j/k tile, 64->128 padding path).
    N, F_IN, F_OUT = 64, 32, 64
    x, adj, weight, bias = _make_inputs(k1, N, F_IN, F_OUT)
    out = jax.block_until_ready(graph_convolution_jit(x, adj, weight, bias))
    assert out.shape == (N, F_OUT) and out.dtype == x.dtype
    ref_b = graph_convolution_ref(x, adj, weight, bias, mxu_dtype=jnp.bfloat16)
    ref_f = graph_convolution_ref(x, adj, weight, bias)
    assert jnp.allclose(out, ref_b, atol=5e-3, rtol=5e-3)   # matches bf16-MXU numerics
    assert jnp.allclose(out, ref_f, atol=5e-2, rtol=5e-2)   # close to fp32 module

    # Secondary test: N is (8,128)-aligned so adj is NOT padded/copied;
    # tm=320 (2 i-tiles), tk=640, tn=256 covering padded F_out (j grid == 1),
    # and the padded output columns are sliced off.
    N2, F_IN2, F_OUT2 = 640, 384, 192
    x2, adj2, weight2, bias2 = _make_inputs(k2, N2, F_IN2, F_OUT2)
    out2 = jax.block_until_ready(graph_convolution_jit(x2, adj2, weight2, bias2))
    assert out2.shape == (N2, F_OUT2)
    ref2_b = graph_convolution_ref(x2, adj2, weight2, bias2, mxu_dtype=jnp.bfloat16)
    ref2_f = graph_convolution_ref(x2, adj2, weight2, bias2)
    assert jnp.allclose(out2, ref2_b, atol=5e-3, rtol=5e-3)
    assert jnp.allclose(out2, ref2_f, atol=5e-2, rtol=5e-2)

    print("KERNEL_OK")
</pallas_src>

<mosaic_0001>
module attributes {stable_mosaic.version = 11 : i64} {
  func.func @_matmul_kernel(%arg0: i32, %arg1: i32, %arg2: i32, %arg3: memref<128x128xbf16, #tpu.memory_space<vmem>>, %arg4: memref<128x128xbf16, #tpu.memory_space<vmem>>, %arg5: memref<128x128xbf16, #tpu.memory_space<vmem>>, %arg6: memref<128x128xf32, #tpu.memory_space<vmem>>) attributes {dimension_semantics = [#tpu.dimension_semantics<parallel>, #tpu.dimension_semantics<parallel>, #tpu.dimension_semantics<arbitrary>], iteration_bounds = array<i64: 1, 1, 1>, scalar_prefetch = 0 : i64, scratch_operands = 1 : i64, tpu.core_type = #tpu.core_type<tc>, window_params = [{transform_indices = @transform_0, window_bounds = array<i64: 128, 128>}, {transform_indices = @transform_1, window_bounds = array<i64: 128, 128>}, {transform_indices = @transform_2, window_bounds = array<i64: 128, 128>}]} {
    %c0_i32 = arith.constant 0 : i32
    %0 = arith.cmpi eq, %arg2, %c0_i32 : i32
    %1 = arith.extui %0 : i1 to i32
    %c0_i32_0 = arith.constant 0 : i32
    %2 = arith.cmpi ne, %1, %c0_i32_0 : i32
    scf.if %2 {
      %cst_10 = arith.constant 0.000000e+00 : f32
      %12 = vector.broadcast %cst_10 : f32 to vector<128x128xf32>
      %c0_11 = arith.constant 0 : index
      %c0_12 = arith.constant 0 : index
      %13 = vector.load %arg6[%c0_11, %c0_12] : memref<128x128xf32, #tpu.memory_space<vmem>>, vector<128x128xf32>
      tpu.vector_store %arg6[%c0_11, %c0_12], %12 {strides = array<i32>} : memref<128x128xf32, #tpu.memory_space<vmem>>, vector<128x128xf32>,
    } else {
    }
    %c0 = arith.constant 0 : index
    %c0_1 = arith.constant 0 : index
    %3 = vector.load %arg6[%c0, %c0_1] : memref<128x128xf32, #tpu.memory_space<vmem>>, vector<128x128xf32>
    %c0_2 = arith.constant 0 : index
    %c0_3 = arith.constant 0 : index
    %4 = vector.load %arg3[%c0_2, %c0_3] : memref<128x128xbf16, #tpu.memory_space<vmem>>, vector<128x128xbf16>
    %c0_4 = arith.constant 0 : index
    %c0_5 = arith.constant 0 : index
    %5 = vector.load %arg4[%c0_4, %c0_5] : memref<128x128xbf16, #tpu.memory_space<vmem>>, vector<128x128xbf16>
    %cst = arith.constant dense<0.000000e+00> : vector<128x128xf32>
    %6 = tpu.matmul %4, %5, %cst {dimension_numbers = #tpu.dot_dimension_numbers<[1], [0], [0], [1], [0, 0, 1, 1], [], []>} : vector<128x128xbf16>, vector<128x128xbf16>, vector<128x128xf32> -> vector<128x128xf32>
    %7 = arith.addf %3, %6 : vector<128x128xf32>
    %c0_6 = arith.constant 0 : index
    %c0_7 = arith.constant 0 : index
    %8 = vector.load %arg6[%c0_6, %c0_7] : memref<128x128xf32, #tpu.memory_space<vmem>>, vector<128x128xf32>
    tpu.vector_store %arg6[%c0_6, %c0_7], %7 {strides = array<i32>} : memref<128x128xf32, #tpu.memory_space<vmem>>, vector<128x128xf32>,
    %c0_i32_8 = arith.constant 0 : i32
    %9 = arith.cmpi eq, %arg2, %c0_i32_8 : i32
    %10 = arith.extui %9 : i1 to i32
    %c0_i32_9 = arith.constant 0 : i32
    %11 = arith.cmpi ne, %10, %c0_i32_9 : i32
    scf.if %11 {
      %c0_10 = arith.constant 0 : index
      %c0_11 = arith.constant 0 : index
      %12 = vector.load %arg6[%c0_10, %c0_11] : memref<128x128xf32, #tpu.memory_space<vmem>>, vector<128x128xf32>
      %13 = arith.truncf %12 : vector<128x128xf32> to vector<128x128xbf16>
      %c0_12 = arith.constant 0 : index
      %c0_13 = arith.constant 0 : index
      %14 = vector.load %arg5[%c0_12, %c0_13] : memref<128x128xbf16, #tpu.memory_space<vmem>>, vector<128x128xbf16>
      tpu.vector_store %arg5[%c0_12, %c0_13], %13 {strides = array<i32>} : memref<128x128xbf16, #tpu.memory_space<vmem>>, vector<128x128xbf16>,
    } else {
    }
    return
  }
  func.func @transform_0(%arg0: i32, %arg1: i32, %arg2: i32) -> (i32, i32) {
    %c0_i32 = arith.constant 0 : i32
    return %arg0, %arg2 : i32, i32
  }
  func.func @transform_1(%arg0: i32, %arg1: i32, %arg2: i32) -> (i32, i32) {
    %c0_i32 = arith.constant 0 : i32
    return %arg2, %arg1 : i32, i32
  }
  func.func @transform_2(%arg0: i32, %arg1: i32, %arg2: i32) -> (i32, i32) {
    %c0_i32 = arith.constant 0 : i32
    return %arg0, %arg1 : i32, i32
  }
}

module attributes {stable_mosaic.version = 11 : i64} {
  func.func @_matmul_bias_kernel(%arg0: i32, %arg1: i32, %arg2: i32, %arg3: memref<32x128xbf16, #tpu.memory_space<vmem>>, %arg4: memref<128x128xbf16, #tpu.memory_space<vmem>>, %arg5: memref<1x128xf32, #tpu.memory_space<vmem>>, %arg6: memref<32x128xf32, #tpu.memory_space<vmem>>, %arg7: memref<32x128xf32, #tpu.memory_space<vmem>>) attributes {dimension_semantics = [#tpu.dimension_semantics<parallel>, #tpu.dimension_semantics<parallel>, #tpu.dimension_semantics<arbitrary>], iteration_bounds = array<i64: 2, 1, 1>, scalar_prefetch = 0 : i64, scratch_operands = 1 : i64, tpu.core_type = #tpu.core_type<tc>, window_params = [{transform_indices = @transform_0, window_bounds = array<i64: 32, 128>}, {transform_indices = @transform_1, window_bounds = array<i64: 128, 128>}, {transform_indices = @transform_2, window_bounds = array<i64: 1, 128>}, {transform_indices = @transform_3, window_bounds = array<i64: 32, 128>}]} {
    %c0_i32 = arith.constant 0 : i32
    %0 = arith.cmpi eq, %arg2, %c0_i32 : i32
    %1 = arith.extui %0 : i1 to i32
    %c0_i32_0 = arith.constant 0 : i32
    %2 = arith.cmpi ne, %1, %c0_i32_0 : i32
    scf.if %2 {
      %cst_10 = arith.constant 0.000000e+00 : f32
      %12 = vector.broadcast %cst_10 : f32 to vector<32x128xf32>
      %c0_11 = arith.constant 0 : index
      %c0_12 = arith.constant 0 : index
      %13 = vector.load %arg7[%c0_11, %c0_12] : memref<32x128xf32, #tpu.memory_space<vmem>>, vector<32x128xf32>
      tpu.vector_store %arg7[%c0_11, %c0_12], %12 {strides = array<i32>} : memref<32x128xf32, #tpu.memory_space<vmem>>, vector<32x128xf32>,
    } else {
    }
    %c0 = arith.constant 0 : index
    %c0_1 = arith.constant 0 : index
    %3 = vector.load %arg7[%c0, %c0_1] : memref<32x128xf32, #tpu.memory_space<vmem>>, vector<32x128xf32>
    %c0_2 = arith.constant 0 : index
    %c0_3 = arith.constant 0 : index
    %4 = vector.load %arg3[%c0_2, %c0_3] : memref<32x128xbf16, #tpu.memory_space<vmem>>, vector<32x128xbf16>
    %c0_4 = arith.constant 0 : index
    %c0_5 = arith.constant 0 : index
    %5 = vector.load %arg4[%c0_4, %c0_5] : memref<128x128xbf16, #tpu.memory_space<vmem>>, vector<128x128xbf16>
    %cst = arith.constant dense<0.000000e+00> : vector<32x128xf32>
    %6 = tpu.matmul %4, %5, %cst {dimension_numbers = #tpu.dot_dimension_numbers<[1], [0], [0], [1], [0, 0, 1, 1], [], []>} : vector<32x128xbf16>, vector<128x128xbf16>, vector<32x128xf32> -> vector<32x128xf32>
    %7 = arith.addf %3, %6 : vector<32x128xf32>
    %c0_6 = arith.constant 0 : index
    %c0_7 = arith.constant 0 : index
    %8 = vector.load %arg7[%c0_6, %c0_7] : memref<32x128xf32, #tpu.memory_space<vmem>>, vector<32x128xf32>
    tpu.vector_store %arg7[%c0_6, %c0_7], %7 {strides = array<i32>} : memref<32x128xf32, #tpu.memory_space<vmem>>, vector<32x128xf32>,
    %c0_i32_8 = arith.constant 0 : i32
    %9 = arith.cmpi eq, %arg2, %c0_i32_8 : i32
    %10 = arith.extui %9 : i1 to i32
    %c0_i32_9 = arith.constant 0 : i32
    %11 = arith.cmpi ne, %10, %c0_i32_9 : i32
    scf.if %11 {
      %c0_10 = arith.constant 0 : index
      %c0_11 = arith.constant 0 : index
      %12 = vector.load %arg7[%c0_10, %c0_11] : memref<32x128xf32, #tpu.memory_space<vmem>>, vector<32x128xf32>
      %c0_12 = arith.constant 0 : index
      %c0_13 = arith.constant 0 : index
      %13 = vector.load %arg5[%c0_12, %c0_13] : memref<1x128xf32, #tpu.memory_space<vmem>>, vector<1x128xf32>
      %14 = vector.broadcast %13 : vector<1x128xf32> to vector<32x128xf32>
      %15 = arith.addf %12, %14 : vector<32x128xf32>
      %c0_14 = arith.constant 0 : index
      %c0_15 = arith.constant 0 : index
      %16 = vector.load %arg6[%c0_14, %c0_15] : memref<32x128xf32, #tpu.memory_space<vmem>>, vector<32x128xf32>
      tpu.vector_store %arg6[%c0_14, %c0_15], %15 {strides = array<i32>} : memref<32x128xf32, #tpu.memory_space<vmem>>, vector<32x128xf32>,
    } else {
    }
    return
  }
  func.func @transform_0(%arg0: i32, %arg1: i32, %arg2: i32) -> (i32, i32) {
    %c0_i32 = arith.constant 0 : i32
    return %arg0, %arg2 : i32, i32
  }
  func.func @transform_1(%arg0: i32, %arg1: i32, %arg2: i32) -> (i32, i32) {
    %c0_i32 = arith.constant 0 : i32
    return %arg2, %arg1 : i32, i32
  }
  func.func @transform_2(%arg0: i32, %arg1: i32, %arg2: i32) -> (i32, i32) {
    %c0_i32 = arith.constant 0 : i32
    %c0_i32_0 = arith.constant 0 : i32
    return %c0_i32, %arg1 : i32, i32
  }
  func.func @transform_3(%arg0: i32, %arg1: i32, %arg2: i32) -> (i32, i32) {
    %c0_i32 = arith.constant 0 : i32
    return %arg0, %arg1 : i32, i32
  }
}

</mosaic_0001>

<llo_original>
// kernel: graph_convolution.3
$region0: #{graph_convolution.3}
  #allocation0 [shape = 'u32[]', space=smem, size = 0x4, offset = 0x4, fixed_abs, tag = 'smem constant byte address 0x4 - core index']
  #allocation1 [shape = 'u32[144,128]{1,0:T(1,128)}', space=vmem, size = 0x12000, scoped, tag = 'internal scratch']
  #allocation2 [shape = 'f32[32,128]{1,0:T(8,128)}', space=vmem, size = 0x4000, scoped, tag = 'scratch operand']
  %s0 = inlined_call_operand.vmem [shape: bf16[64,128], index: 0, kind: input, shape index: {}]
  %s1 = inlined_call_operand.vmem [shape: bf16[128,128], index: 1, kind: input, shape index: {}]
  %s2 = inlined_call_operand.vmem [shape: f32[1,128], index: 2, kind: input, shape index: {}]
  %s3 = inlined_call_operand.hbm [shape: f32[64,128], index: 3, kind: output, shape index: {}]
  %s4 = sld [smem:[#allocation0]]
  $region53: #{graph_convolution.3} parent=0
    _
  %s6 = ssub.s32 1, %s4
  %s7 = scalar_select 0, %s6, %s4
  $region1: #{graph_convolution.3} parent=0
    #allocation3 [shape = 'u8[32768]{0}', space=vmem, size = 0x8000, scoped, tag = 'output window, operand 0']
    #allocation4 [shape = 's32[2]{0}', space=sflag, size = 0x8, scoped, tag = 'scoped memory for graph_convolution.3']
    %8 = vsyncpa [#allocation4], 0
    %s9 = scalar_lea.sflag [#allocation4], 1
    %10 = vsyncpa %s9, 0
    loop: start=0, step=1, limit=4
    $region2: #{graph_convolution.3} parent=1 // loop_pre_header
      _
    $region3: #{graph_convolution.3} parent=1 // loop_header
      %s12 = sphi 0, %s16
      %p13 = scmp.ge.s32.totalorder %s12, 4
      %s19 = sphi 0, %s38
      %s20 = sphi 0, %s34
      %s21 = sphi 0, %s30
      %s22 = sphi 0, %s19
      %s23 = sphi 0, %s20
      %s24 = sphi 0, %s21
      %s25 = sphi 0, %s22
      %s26 = sphi 0, %s23
      %s27 = sphi 0, %s24
      %s43 = sphi 0, %s45
      %s46 = sphi 0, %s43
      %s47 = sphi 0, %s46
      %s63 = sphi 0, %s47
      %s71 = sphi 0, %s73
      %s74 = sphi 0, %s71
      %s75 = sphi 0, %s74
      %s91 = sphi 0, %s75
      %s97 = sphi 0, %s99
      %s100 = sphi 0, %s97
      %s101 = sphi 0, %s100
      %s117 = sphi 0, %s101
      %s125 = sphi 0, %s127
      %s128 = sphi 0, %s125
      %s129 = sphi 0, %s128
      %s145 = sphi 0, %s129
    $region4: #{graph_convolution.3} parent=1 // loop_header_branch
      %15 = sbr.rel (%p13) target = $region8
    $region5: #{graph_convolution.3} parent=1 // loop_body
      %s17 = ssub.s32 %s12, 1
      %s18 = ssub.s32 %s12, 2
      %s28 = sadd.s32 1, %s21
      %p29 = scmp.ge.s32.totalorder %s28, 1
      %s30 = scalar_select %p29, 0, %s28
      %s31 = sadd.s32 1, %s20
      %s32 = scalar_select %p29, %s31, %s20
      %p33 = scmp.ge.s32.totalorder %s32, 1
      %s34 = scalar_select %p33, 0, %s32
      %s35 = sadd.s32 1, %s19
      %s36 = scalar_select %p33, %s35, %s19
      %p37 = scmp.ge.s32.totalorder %s36, 2
      %s38 = scalar_select %p37, 0, %s36
      %s39 = ssub.s32 %s19, %s38
      %s40 = ssub.s32 %s21, %s30
      %s41 = sor.u32 %s39, %s40
      %p42 = scmp.eq.s32.totalorder %s41, 0
      %s44 = sadd.s32 %s43, 1
      %s45 = scalar_select %p42, %s43, %s44
      %p48 = pneg %p42
      %p49 = scmp.eq.s32.totalorder %s12, 1
      %p50 = por %p48, %p49
      %p51 = scmp.ne.s32.totalorder %s43, %s46
      %p52 = scmp.eq.s32.totalorder %s12, 0
      %p53 = por %p51, %p52
      %p54 = scmp.ne.s32.totalorder %s43, %s46
      %p55 = scmp.eq.s32.totalorder %s17, 1
      %p56 = por %p54, %p55
      %p57 = scmp.ne.s32.totalorder %s46, %s47
      %p58 = scmp.eq.s32.totalorder %s17, 0
      %p59 = por %p57, %p58
      %p60 = scmp.ne.s32.totalorder %s46, %s47
      %p61 = scmp.eq.s32.totalorder %s18, 1
      %p62 = por %p60, %p61
      %p64 = scmp.ne.s32.totalorder %s47, %s63
      %p65 = scmp.eq.s32.totalorder %s18, 0
      %p66 = por %p64, %p65
      %s67 = ssub.s32 %s21, %s30
      %s68 = ssub.s32 %s20, %s34
      %s69 = sor.u32 %s67, %s68
      %p70 = scmp.eq.s32.totalorder %s69, 0
      %s72 = sadd.s32 %s71, 1
      %s73 = scalar_select %p70, %s71, %s72
      %p76 = pneg %p70
      %p77 = scmp.eq.s32.totalorder %s12, 1
      %p78 = por %p76, %p77
      %p79 = scmp.ne.s32.totalorder %s71, %s74
      %p80 = scmp.eq.s32.totalorder %s12, 0
      %p81 = por %p79, %p80
      %p82 = scmp.ne.s32.totalorder %s71, %s74
      %p83 = scmp.eq.s32.totalorder %s17, 1
      %p84 = por %p82, %p83
      %p85 = scmp.ne.s32.totalorder %s74, %s75
      %p86 = scmp.eq.s32.totalorder %s17, 0
      %p87 = por %p85, %p86
      %p88 = scmp.ne.s32.totalorder %s74, %s75
      %p89 = scmp.eq.s32.totalorder %s18, 1
      %p90 = por %p88, %p89
      %p92 = scmp.ne.s32.totalorder %s75, %s91
      %p93 = scmp.eq.s32.totalorder %s18, 0
      %p94 = por %p92, %p93
      %s95 = ssub.s32 %s20, %s34
      %p96 = scmp.eq.s32.totalorder %s95, 0
      %s98 = sadd.s32 %s97, 1
      %s99 = scalar_select %p96, %s97, %s98
      %p102 = pneg %p96
      %p103 = scmp.eq.s32.totalorder %s12, 1
      %p104 = por %p102, %p103
      %p105 = scmp.ne.s32.totalorder %s97, %s100
      %p106 = scmp.eq.s32.totalorder %s12, 0
      %p107 = por %p105, %p106
      %p108 = scmp.ne.s32.totalorder %s97, %s100
      %p109 = scmp.eq.s32.totalorder %s17, 1
      %p110 = por %p108, %p109
      %p111 = scmp.ne.s32.totalorder %s100, %s101
      %p112 = scmp.eq.s32.totalorder %s17, 0
      %p113 = por %p111, %p112
      %p114 = scmp.ne.s32.totalorder %s100, %s101
      %p115 = scmp.eq.s32.totalorder %s18, 1
      %p116 = por %p114, %p115
      %p118 = scmp.ne.s32.totalorder %s101, %s117
      %p119 = scmp.eq.s32.totalorder %s18, 0
      %p120 = por %p118, %p119
      %s121 = ssub.s32 %s19, %s38
      %s122 = ssub.s32 %s20, %s34
      %s123 = sor.u32 %s121, %s122
      %p124 = scmp.eq.s32.totalorder %s123, 0
      %s126 = sadd.s32 %s125, 1
      %s127 = scalar_select %p124, %s125, %s126
      %p130 = pneg %p124
      %p131 = scmp.eq.s32.totalorder %s12, 1
      %p132 = por %p130, %p131
      %p133 = scmp.ne.s32.totalorder %s125, %s128
      %p134 = scmp.eq.s32.totalorder %s12, 0
      %p135 = por %p133, %p134
      %p136 = scmp.ne.s32.totalorder %s125, %s128
      %p137 = scmp.eq.s32.totalorder %s17, 1
      %p138 = por %p136, %p137
      %p139 = scmp.ne.s32.totalorder %s128, %s129
      %p140 = scmp.eq.s32.totalorder %s17, 0
      %p141 = por %p139, %p140
      %p142 = scmp.ne.s32.totalorder %s128, %s129
      %p143 = scmp.eq.s32.totalorder %s18, 1
      %p144 = por %p142, %p143
      %p146 = scmp.ne.s32.totalorder %s129, %s145
      %p147 = scmp.eq.s32.totalorder %s18, 0
      %p148 = por %p146, %p147
      %p149 = scmp.le.s32.totalorder 1, %s12
      %p150 = scmp.lt.s32.totalorder %s12, 3
      %p151 = pnand %p149, %p150
      %p152 = pneg %p151
      // Predicated region
      $region9: #{graph_convolution.3} parent=5 // pred_check
        _
      $region10: #{graph_convolution.3} parent=5 // pred_check_branch
        %154 = sbr.rel (%p151) target = $region12
      $region11: #{graph_convolution.3} parent=5 // pred_region
        %s155 = ssub.s32 %s12, 1
        // Predicated region
        $region13: #{graph_convolution.3} parent=11 // pred_check
          %p156 = pneg %p87
        $region14: #{graph_convolution.3} parent=11 // pred_check_branch
          %158 = sbr.rel (%p156) target = $region16
        $region15: #{graph_convolution.3} parent=11 // pred_region
          %s159 = smul.u32 16, %s24
          %p160 = scmp.lt.s32.totalorder %s159, 15
          %s161 = scalar_select %p160, %s159, 15
          %p162 = scmp.lt.s32.totalorder %s23, 0
          %s163 = scalar_select %p162, %s23, 0
          %s164 = sadd.s32 %s163, %s161
          %s165 = smul.addr %s164, 4
          %s166 = scalar_lea.vmem %s1, %s165
          %s167 = smul.u32 16, %s24
        $region16: #{graph_convolution.3} parent=11 // pred_fallthru
          _
        // Predicated region
        $region17: #{graph_convolution.3} parent=11 // pred_check
          %p168 = pneg %p113
        $region18: #{graph_convolution.3} parent=11 // pred_check_branch
          %170 = sbr.rel (%p168) target = $region20
        $region19: #{graph_convolution.3} parent=11 // pred_region
          %p171 = scmp.lt.s32.totalorder %s23, 0
          %s172 = scalar_select %p171, %s23, 0
          %s173 = scalar_lea.vmem %s2, %s172
        $region20: #{graph_convolution.3} parent=11 // pred_fallthru
          _
      $region12: #{graph_convolution.3} parent=5 // pred_fallthru
        _
      %p174 = scmp.lt.s32.totalorder %s12, 2
      // Predicated region
      $region21: #{graph_convolution.3} parent=5 // pred_check
        %p175 = pneg %p174
      $region22: #{graph_convolution.3} parent=5 // pred_check_branch
        %177 = sbr.rel (%p175) target = $region24
      $region23: #{graph_convolution.3} parent=5 // pred_region
        // Predicated region
        $region25: #{graph_convolution.3} parent=23 // pred_check
          %p178 = pneg %p53
        $region26: #{graph_convolution.3} parent=23 // pred_check_branch
          %180 = sbr.rel (%p178) target = $region28
        $region27: #{graph_convolution.3} parent=23 // pred_region
          %s181 = smul.u32 4, %s19
          %p182 = scmp.lt.s32.totalorder %s181, 7
          %s183 = scalar_select %p182, %s181, 7
          %p184 = scmp.lt.s32.totalorder %s21, 0
          %s185 = scalar_select %p184, %s21, 0
          %s186 = sadd.s32 %s185, %s183
          %s187 = smul.addr %s186, 4
          %s188 = scalar_lea.vmem %s0, %s187
          %s189 = smul.u32 4, %s19
        $region28: #{graph_convolution.3} parent=23 // pred_fallthru
          _
      $region24: #{graph_convolution.3} parent=5 // pred_fallthru
        _
      %p190 = scmp.le.s32.totalorder 1, %s12
      %p191 = scmp.lt.s32.totalorder %s12, 3
      %p192 = pnand %p190, %p191
      %p193 = pneg %p192
      // Predicated region
      $region29: #{graph_convolution.3} parent=5 // pred_check
        _
      $region30: #{graph_convolution.3} parent=5 // pred_check_branch
        %195 = sbr.rel (%p192) target = $region32
      $region31: #{graph_convolution.3} parent=5 // pred_region
        %s196 = ssub.s32 %s12, 1
        %s197 = smul.u32 4, %s22
        %p198 = scmp.lt.s32.totalorder %s197, 7
        %s199 = scalar_select %p198, %s197, 7
        %p200 = scmp.lt.s32.totalorder %s24, 0
        %s201 = scalar_select %p200, %s24, 0
        %s202 = sadd.s32 %s201, %s199
        %s203 = smul.addr %s202, 4
        %s204 = scalar_lea.vmem %s0, %s203
        %p205 = pneg %p59
        %p206 = pneg %p56
        %s207 = smul.u32 16, %s24
        %p208 = scmp.lt.s32.totalorder %s207, 15
        %s209 = scalar_select %p208, %s207, 15
        %p210 = scmp.lt.s32.totalorder %s23, 0
        %s211 = scalar_select %p210, %s23, 0
        %s212 = sadd.s32 %s211, %s209
        %s213 = smul.addr %s212, 4
        %s214 = scalar_lea.vmem %s1, %s213
        %p215 = pneg %p87
        %p216 = pneg %p84
        %p217 = scmp.lt.s32.totalorder %s23, 0
        %s218 = scalar_select %p217, %s23, 0
        %s219 = scalar_lea.vmem %s2, %s218
        %p220 = pneg %p113
        %p221 = pneg %p110
        %p222 = pneg %p141
        %p223 = pneg %p138
        %s224 = sand.u32 %s128, 1
        %s225 = scalar_lea.sflag [#allocation4], %s224
        %s226 = sand.u32 %s128, 1
        %s227 = smul.addr %s226, 32
        %s228 = scalar_lea.vmem [#allocation3], %s227
        %s229 = smul.u32 4, %s22
        %p230 = scmp.lt.s32.totalorder %s229, 7
        %s231 = scalar_select %p230, %s229, 7
        %p232 = scmp.lt.s32.totalorder %s24, 0
        %s233 = scalar_select %p232, %s24, 0
        %s234 = sadd.s32 %s233, %s231
        %s235 = smul.addr %s234, 4
        %s236 = scalar_lea.vmem %s0, %s235
        %s237 = smul.u32 4, %s22
        %s238 = smul.u32 16, %s24
        %p239 = scmp.lt.s32.totalorder %s238, 15
        %s240 = scalar_select %p239, %s238, 15
        %p241 = scmp.lt.s32.totalorder %s23, 0
        %s242 = scalar_select %p241, %s23, 0
        %s243 = sadd.s32 %s242, %s240
        %s244 = smul.addr %s243, 4
        %s245 = scalar_lea.vmem %s1, %s244
        %s246 = smul.u32 16, %s24
        %p247 = scmp.lt.s32.totalorder %s23, 0
        %s248 = scalar_select %p247, %s23, 0
        %s249 = scalar_lea.vmem %s2, %s248
        %s250 = smul.u32 4, %s22
        %p252 = scmp.eq.s32.totalorder %s24, 0
        // Predicated region
        $region33: #{graph_convolution.3} parent=31 // pred_check
          %p253 = pneg %p252
        $region34: #{graph_convolution.3} parent=31 // pred_check_branch
          %255 = sbr.rel (%p253) target = $region36
        $region35: #{graph_convolution.3} parent=31 // pred_region
          %256 = vst [vmem:[#allocation2] sm:$0xff] 0.0
          %257 = vst [vmem:[#allocation2 + $0x8] sm:$0xff] 0.0
          %258 = vst [vmem:[#allocation2 + $0x10] sm:$0xff] 0.0
          %259 = vst [vmem:[#allocation2 + $0x18] sm:$0xff] 0.0
        $region36: #{graph_convolution.3} parent=31 // pred_fallthru
          _
        %v260 = vld [vmem:[#allocation2] sm:$0xff]
        %v261 = vld [vmem:[#allocation2 + $0x8] sm:$0xff]
        %v262 = vld [vmem:[#allocation2 + $0x10] sm:$0xff]
        %v263 = vld [vmem:[#allocation2 + $0x18] sm:$0xff]
        %v264 = vld [vmem:[%s236] sm:$0xf]
        %v265 = vld [vmem:[%s236 + $0x4] sm:$0xf]
        %v266 = vld [vmem:[%s236 + $0x8] sm:$0xf]
        %v267 = vld [vmem:[%s236 + $0xc] sm:$0xf]
        %v268 = vld [vmem:[%s245] sm:$0xf]
        %v269 = vld [vmem:[%s245 + $0x4] sm:$0xf]
        %v270 = vld [vmem:[%s245 + $0x8] sm:$0xf]
        %v271 = vld [vmem:[%s245 + $0xc] sm:$0xf]
        %v272 = vld [vmem:[%s245 + $0x10] sm:$0xf]
        %v273 = vld [vmem:[%s245 + $0x14] sm:$0xf]
        %v274 = vld [vmem:[%s245 + $0x18] sm:$0xf]
        %v275 = vld [vmem:[%s245 + $0x1c] sm:$0xf]
        %v276 = vld [vmem:[%s245 + $0x20] sm:$0xf]
        %v277 = vld [vmem:[%s245 + $0x24] sm:$0xf]
        %v278 = vld [vmem:[%s245 + $0x28] sm:$0xf]
        %v279 = vld [vmem:[%s245 + $0x2c] sm:$0xf]
        %v280 = vld [vmem:[%s245 + $0x30] sm:$0xf]
        %v281 = vld [vmem:[%s245 + $0x34] sm:$0xf]
        %v282 = vld [vmem:[%s245 + $0x38] sm:$0xf]
        %v283 = vld [vmem:[%s245 + $0x3c] sm:$0xf]
        %v288 = vunpack.c.l.b16 %v264
        %v289 = vunpack.c.l.b16 %v265
        %v290 = vunpack.c.l.b16 %v266
        %v291 = vunpack.c.l.b16 %v267
        %v292 = vpack.c.b16 %v289, %v288
        %v293 = vpack.c.b16 %v291, %v290
        %v312 = vunpack.c.l.b16 %v268
        %v313 = vunpack.c.l.b16 %v269
        %v314 = vunpack.c.l.b16 %v270
        %v315 = vunpack.c.l.b16 %v271
        %v316 = vunpack.c.l.b16 %v272
        %v317 = vunpack.c.l.b16 %v273
        %v318 = vunpack.c.l.b16 %v274
        %v319 = vunpack.c.l.b16 %v275
        %v320 = vunpack.c.l.b16 %v276
        %v321 = vunpack.c.l.b16 %v277
        %v322 = vunpack.c.l.b16 %v278
        %v323 = vunpack.c.l.b16 %v279
        %v324 = vunpack.c.l.b16 %v280
        %v325 = vunpack.c.l.b16 %v281
        %v326 = vunpack.c.l.b16 %v282
        %v327 = vunpack.c.l.b16 %v283
        %v328 = vpack.c.b16 %v313, %v312
        %v329 = vpack.c.b16 %v315, %v314
        %v330 = vpack.c.b16 %v317, %v316
        %v331 = vpack.c.b16 %v319, %v318
        %v332 = vpack.c.b16 %v321, %v320
        %v333 = vpack.c.b16 %v323, %v322
        %v334 = vpack.c.b16 %v325, %v324
        %v335 = vpack.c.b16 %v327, %v326
        %344 = vmatprep.subr.bf16.mxu0 0
        %345 = vmatpush1.bf16.msra.mxu0 %v328
        %346 = vmatprep.subr.bf16.mxu0 0
        %347 = vmatpush1.bf16.msra.mxu0 %v329
        %348 = vmatprep.subr.bf16.mxu0 0
        %349 = vmatpush1.bf16.msra.mxu0 %v330
        %350 = vmatprep.subr.bf16.mxu0 0
        %351 = vmatpush1.bf16.msra.mxu0 %v331
        %352 = vmatprep.subr.bf16.mxu0 0
        %353 = vmatpush1.bf16.msra.mxu0 %v332
        %354 = vmatprep.subr.bf16.mxu0 0
        %355 = vmatpush1.bf16.msra.mxu0 %v333
        %356 = vmatprep.subr.bf16.mxu0 0
        %357 = vmatpush1.bf16.msra.mxu0 %v334
        %358 = vmatprep.subr.bf16.mxu0 0
        %359 = vmatpush1.bf16.msra.mxu0 %v335
        %360 = vmatprep.subr.bf16.mxu0 0
        %361 = vmatpush1.bf16.msra.mxu0 0
        %362 = vmatprep.subr.bf16.mxu0 0
        %363 = vmatpush1.bf16.msra.mxu0 0
        %364 = vmatprep.subr.bf16.mxu0 0
        %365 = vmatpush1.bf16.msra.mxu0 0
        %366 = vmatprep.subr.bf16.mxu0 0
        %367 = vmatpush1.bf16.msra.mxu0 0
        %368 = vmatprep.subr.bf16.mxu0 0
        %369 = vmatpush1.bf16.msra.mxu0 0
        %370 = vmatprep.subr.bf16.mxu0 0
        %371 = vmatpush1.bf16.msra.mxu0 0
        %372 = vmatprep.subr.bf16.mxu0 0
        %373 = vmatpush1.bf16.msra.mxu0 0
        %374 = vmatprep.subr.bf16.mxu0 0
        %375 = vmatpush1.bf16.msra.mxu0 0
        %376 = vmatprep.mubr.bf16.mxu0 0
        %377 = vmatmul.mubr.bf16.gmra.mrb[0].mxu0 %v292
        %v378 = vpop.f32.mrb[0].mxu0
        %v379 = vadd.f32 0.0, %v378
        %v380 = vpop.f32.mrb[0].mxu0
        %v381 = vpop.f32.mrb[0].mxu0
        %v382 = vadd.f32 0.0, %v381
        %v383 = vpop.f32.mrb[0].mxu0
        %384 = vmatprep.mubr.bf16.mxu0 0
        %385 = vmatmul.mubr.bf16.gmra.mrb[0].mxu0 %v293
        %v386 = vpop.f32.mrb[0].mxu0
        %v387 = vadd.f32 0.0, %v386
        %v388 = vpop.f32.mrb[0].mxu0
        %v389 = vpop.f32.mrb[0].mxu0
        %v390 = vadd.f32 0.0, %v389
        %v391 = vpop.f32.mrb[0].mxu0
        %392 = vdwg.mxu0
        %v393 = vadd.f32 %v260, %v379
        %v394 = vadd.f32 %v261, %v382
        %v395 = vadd.f32 %v262, %v387
        %v396 = vadd.f32 %v263, %v390
        %397 = vst [vmem:[#allocation2] sm:$0xff] %v393
        %398 = vst [vmem:[#allocation2 + $0x8] sm:$0xff] %v394
        %399 = vst [vmem:[#allocation2 + $0x10] sm:$0xff] %v395
        %400 = vst [vmem:[#allocation2 + $0x18] sm:$0xff] %v396
        // Predicated region
        $region37: #{graph_convolution.3} parent=31 // pred_check
          %p401 = pneg %p252
        $region38: #{graph_convolution.3} parent=31 // pred_check_branch
          %403 = sbr.rel (%p401) target = $region40
        $region39: #{graph_convolution.3} parent=31 // pred_region
          %v404 = vld [vmem:[#allocation2] sm:$0xff]
          %v405 = vld [vmem:[#allocation2 + $0x8] sm:$0xff]
          %v406 = vld [vmem:[#allocation2 + $0x10] sm:$0xff]
          %v407 = vld [vmem:[#allocation2 + $0x18] sm:$0xff]
          %v408 = vld [vmem:[%s249] sm:$0x1]
          %v410 = vlaneseq
          %v411 = vshrl.u32 %v410, 7
          %v412 = vsub.s32 0, %v411
          %v413 = vrot.slane %v408, %v412
          %v415 = vadd.f32 %v404, %v413
          %v416 = vadd.f32 %v405, %v413
          %v417 = vadd.f32 %v406, %v413
          %v418 = vadd.f32 %v407, %v413
          %419 = vst [vmem:[%s228] sm:$0xff] %v415
          %420 = vst [vmem:[%s228 + $0x8] sm:$0xff] %v416
          %421 = vst [vmem:[%s228 + $0x10] sm:$0xff] %v417
          %422 = vst [vmem:[%s228 + $0x18] sm:$0xff] %v418
        $region40: #{graph_convolution.3} parent=31 // pred_fallthru
          _
        %s423 = sand.u32 %s128, 1
        %s424 = scalar_lea.sflag [#allocation4], %s423
        %s425 = sand.u32 %s128, 1
        %s426 = smul.addr %s425, 32
        %s427 = scalar_lea.vmem [#allocation3], %s426
        // Predicated region
        $region41: #{graph_convolution.3} parent=31 // pred_check
          %p428 = pneg %p138
        $region42: #{graph_convolution.3} parent=31 // pred_check_branch
          %430 = sbr.rel (%p428) target = $region44
        $region43: #{graph_convolution.3} parent=31 // pred_region
          %s431 = smul.u32 4, %s22
          %s433 = ssub.s32 512, 512
          %434 = vsyncadd %s424, %s433
          %s435 = sadd.s32 %s23, %s431
          %s436 = smul.addr %s435, 128
          %s437 = scalar_lea.hbm %s3, %s436
          %s438 = sshll.u32 %s427, 4
          %s439 = int_to_ptr.vmem [resolvable:$true] %s438
          %444 = dma.vmem_to_hbm [thread:$0]  %s439, 512, %s437, %s424, 128, 128, 8
        $region44: #{graph_convolution.3} parent=31 // pred_fallthru
          _
      $region32: #{graph_convolution.3} parent=5 // pred_fallthru
        _
      %p445 = scmp.le.s32.totalorder 2, %s12
      // Predicated region
      $region45: #{graph_convolution.3} parent=5 // pred_check
        %p446 = pneg %p445
      $region46: #{graph_convolution.3} parent=5 // pred_check_branch
        %448 = sbr.rel (%p446) target = $region48
      $region47: #{graph_convolution.3} parent=5 // pred_region
        %s449 = ssub.s32 %s12, 2
        // Predicated region
        $region49: #{graph_convolution.3} parent=47 // pred_check
          %p450 = pneg %p144
        $region50: #{graph_convolution.3} parent=47 // pred_check_branch
          %452 = sbr.rel (%p450) target = $region52
        $region51: #{graph_convolution.3} parent=47 // pred_region
          %s453 = sand.u32 %s129, 1
          %s454 = scalar_lea.sflag [#allocation4], %s453
          %s455 = sand.u32 %s129, 1
          %s456 = smul.addr %s455, 32
          %s457 = scalar_lea.vmem [#allocation3], %s456
          %458 = dma.done %s454, 512
        $region52: #{graph_convolution.3} parent=47 // pred_fallthru
          _
      $region48: #{graph_convolution.3} parent=5 // pred_fallthru
        _
    $region6: #{graph_convolution.3} parent=1 // loop_footer
      %s16 = sadd.s32 1, %s12
    $region7: #{graph_convolution.3} parent=1 // loop_footer_branch
      %11 = sbr.rel target = $region3
    $region8: #{graph_convolution.3} parent=1 // loop_exit
      _
    %459 = vsyncpa [#allocation4], 1
    %s460 = scalar_lea.sflag [#allocation4], 1
    %461 = vsyncpa %s460, 1

// kernel: graph_convolution.2
$region0: #{graph_convolution.2}
  #allocation0 [shape = 'u32[]', space=smem, size = 0x4, offset = 0x4, fixed_abs, tag = 'smem constant byte address 0x4 - core index']
  #allocation1 [shape = 'u32[144,128]{1,0:T(1,128)}', space=vmem, size = 0x12000, scoped, tag = 'internal scratch']
  #allocation2 [shape = 'f32[128,128]{1,0:T(8,128)}', space=vmem, size = 0x10000, scoped, tag = 'scratch operand']
  %s0 = inlined_call_operand.vmem [shape: bf16[128,128], index: 0, kind: input, shape index: {}]
  %s1 = inlined_call_operand.vmem [shape: bf16[128,128], index: 1, kind: input, shape index: {}]
  %s2 = inlined_call_operand.vmem [shape: bf16[128,128], index: 2, kind: output, shape index: {}]
  %s3 = sld [smem:[#allocation0]]
  $region26: #{graph_convolution.2} parent=0
    _
  %s5 = ssub.s32 1, %s3
  %s6 = scalar_select 0, %s5, %s3
  // Predicated region
  $region2: #{graph_convolution.2} parent=0 // pred_check
    _
  $region3: #{graph_convolution.2} parent=0 // pred_check_branch
    %8 = sbr.rel (0) target = $region5
  $region4: #{graph_convolution.2} parent=0 // pred_region
    _
  $region5: #{graph_convolution.2} parent=0 // pred_fallthru
    _
  // Predicated region
  $region6: #{graph_convolution.2} parent=0 // pred_check
    _
  $region7: #{graph_convolution.2} parent=0 // pred_check_branch
    %10 = sbr.rel (0) target = $region9
  $region8: #{graph_convolution.2} parent=0 // pred_region
    _
  $region9: #{graph_convolution.2} parent=0 // pred_fallthru
    _
  %p12 = scmp.eq.s32.totalorder 0, 0
  // Predicated region
  $region10: #{graph_convolution.2} parent=0 // pred_check
    %p13 = pneg %p12
  $region11: #{graph_convolution.2} parent=0 // pred_check_branch
    %15 = sbr.rel (%p13) target = $region13
  $region12: #{graph_convolution.2} parent=0 // pred_region
    %16 = vst [vmem:[#allocation2] sm:$0xff] 0.0
    %17 = vst [vmem:[#allocation2 + $0x8] sm:$0xff] 0.0
    %18 = vst [vmem:[#allocation2 + $0x10] sm:$0xff] 0.0
    %19 = vst [vmem:[#allocation2 + $0x18] sm:$0xff] 0.0
    %20 = vst [vmem:[#allocation2 + $0x20] sm:$0xff] 0.0
    %21 = vst [vmem:[#allocation2 + $0x28] sm:$0xff] 0.0
    %22 = vst [vmem:[#allocation2 + $0x30] sm:$0xff] 0.0
    %23 = vst [vmem:[#allocation2 + $0x38] sm:$0xff] 0.0
    %24 = vst [vmem:[#allocation2 + $0x40] sm:$0xff] 0.0
    %25 = vst [vmem:[#allocation2 + $0x48] sm:$0xff] 0.0
    %26 = vst [vmem:[#allocation2 + $0x50] sm:$0xff] 0.0
    %27 = vst [vmem:[#allocation2 + $0x58] sm:$0xff] 0.0
    %28 = vst [vmem:[#allocation2 + $0x60] sm:$0xff] 0.0
    %29 = vst [vmem:[#allocation2 + $0x68] sm:$0xff] 0.0
    %30 = vst [vmem:[#allocation2 + $0x70] sm:$0xff] 0.0
    %31 = vst [vmem:[#allocation2 + $0x78] sm:$0xff] 0.0
  $region13: #{graph_convolution.2} parent=0 // pred_fallthru
    _
  %v32 = vld [vmem:[#allocation2] sm:$0xff]
  %v33 = vld [vmem:[#allocation2 + $0x8] sm:$0xff]
  %v34 = vld [vmem:[#allocation2 + $0x10] sm:$0xff]
  %v35 = vld [vmem:[#allocation2 + $0x18] sm:$0xff]
  %v36 = vld [vmem:[#allocation2 + $0x20] sm:$0xff]
  %v37 = vld [vmem:[#allocation2 + $0x28] sm:$0xff]
  %v38 = vld [vmem:[#allocation2 + $0x30] sm:$0xff]
  %v39 = vld [vmem:[#allocation2 + $0x38] sm:$0xff]
  %v40 = vld [vmem:[#allocation2 + $0x40] sm:$0xff]
  %v41 = vld [vmem:[#allocation2 + $0x48] sm:$0xff]
  %v42 = vld [vmem:[#allocation2 + $0x50] sm:$0xff]
  %v43 = vld [vmem:[#allocation2 + $0x58] sm:$0xff]
  %v44 = vld [vmem:[#allocation2 + $0x60] sm:$0xff]
  %v45 = vld [vmem:[#allocation2 + $0x68] sm:$0xff]
  %v46 = vld [vmem:[#allocation2 + $0x70] sm:$0xff]
  %v47 = vld [vmem:[#allocation2 + $0x78] sm:$0xff]
  %v48 = vld [vmem:[%s0] sm:$0xf]
  %v49 = vld [vmem:[%s0 + $0x4] sm:$0xf]
  %v50 = vld [vmem:[%s0 + $0x8] sm:$0xf]
  %v51 = vld [vmem:[%s0 + $0xc] sm:$0xf]
  %v52 = vld [vmem:[%s0 + $0x10] sm:$0xf]
  %v53 = vld [vmem:[%s0 + $0x14] sm:$0xf]
  %v54 = vld [vmem:[%s0 + $0x18] sm:$0xf]
  %v55 = vld [vmem:[%s0 + $0x1c] sm:$0xf]
  %v56 = vld [vmem:[%s0 + $0x20] sm:$0xf]
  %v57 = vld [vmem:[%s0 + $0x24] sm:$0xf]
  %v58 = vld [vmem:[%s0 + $0x28] sm:$0xf]
  %v59 = vld [vmem:[%s0 + $0x2c] sm:$0xf]
  %v60 = vld [vmem:[%s0 + $0x30] sm:$0xf]
  %v61 = vld [vmem:[%s0 + $0x34] sm:$0xf]
  %v62 = vld [vmem:[%s0 + $0x38] sm:$0xf]
  %v63 = vld [vmem:[%s0 + $0x3c] sm:$0xf]
  %v64 = vld [vmem:[%s1] sm:$0xf]
  %v65 = vld [vmem:[%s1 + $0x4] sm:$0xf]
  %v66 = vld [vmem:[%s1 + $0x8] sm:$0xf]
  %v67 = vld [vmem:[%s1 + $0xc] sm:$0xf]
  %v68 = vld [vmem:[%s1 + $0x10] sm:$0xf]
  %v69 = vld [vmem:[%s1 + $0x14] sm:$0xf]
  %v70 = vld [vmem:[%s1 + $0x18] sm:$0xf]
  %v71 = vld [vmem:[%s1 + $0x1c] sm:$0xf]
  %v72 = vld [vmem:[%s1 + $0x20] sm:$0xf]
  %v73 = vld [vmem:[%s1 + $0x24] sm:$0xf]
  %v74 = vld [vmem:[%s1 + $0x28] sm:$0xf]
  %v75 = vld [vmem:[%s1 + $0x2c] sm:$0xf]
  %v76 = vld [vmem:[%s1 + $0x30] sm:$0xf]
  %v77 = vld [vmem:[%s1 + $0x34] sm:$0xf]
  %v78 = vld [vmem:[%s1 + $0x38] sm:$0xf]
  %v79 = vld [vmem:[%s1 + $0x3c] sm:$0xf]
  %v96 = vunpack.c.l.b16 %v48
  %v97 = vunpack.c.l.b16 %v49
  %v98 = vunpack.c.l.b16 %v50
  %v99 = vunpack.c.l.b16 %v51
  %v100 = vunpack.c.l.b16 %v52
  %v101 = vunpack.c.l.b16 %v53
  %v102 = vunpack.c.l.b16 %v54
  %v103 = vunpack.c.l.b16 %v55
  %v104 = vunpack.c.l.b16 %v56
  %v105 = vunpack.c.l.b16 %v57
  %v106 = vunpack.c.l.b16 %v58
  %v107 = vunpack.c.l.b16 %v59
  %v108 = vunpack.c.l.b16 %v60
  %v109 = vunpack.c.l.b16 %v61
  %v110 = vunpack.c.l.b16 %v62
  %v111 = vunpack.c.l.b16 %v63
  %v112 = vpack.c.b16 %v97, %v96
  %v113 = vpack.c.b16 %v99, %v98
  %v114 = vpack.c.b16 %v101, %v100
  %v115 = vpack.c.b16 %v103, %v102
  %v116 = vpack.c.b16 %v105, %v104
  %v117 = vpack.c.b16 %v107, %v106
  %v118 = vpack.c.b16 %v109, %v108
  %v119 = vpack.c.b16 %v111, %v110
  %v144 = vunpack.c.l.b16 %v64
  %v145 = vunpack.c.l.b16 %v65
  %v146 = vunpack.c.l.b16 %v66
  %v147 = vunpack.c.l.b16 %v67
  %v148 = vunpack.c.l.b16 %v68
  %v149 = vunpack.c.l.b16 %v69
  %v150 = vunpack.c.l.b16 %v70
  %v151 = vunpack.c.l.b16 %v71
  %v152 = vunpack.c.l.b16 %v72
  %v153 = vunpack.c.l.b16 %v73
  %v154 = vunpack.c.l.b16 %v74
  %v155 = vunpack.c.l.b16 %v75
  %v156 = vunpack.c.l.b16 %v76
  %v157 = vunpack.c.l.b16 %v77
  %v158 = vunpack.c.l.b16 %v78
  %v159 = vunpack.c.l.b16 %v79
  %v160 = vpack.c.b16 %v145, %v144
  %v161 = vpack.c.b16 %v147, %v146
  %v162 = vpack.c.b16 %v149, %v148
  %v163 = vpack.c.b16 %v151, %v150
  %v164 = vpack.c.b16 %v153, %v152
  %v165 = vpack.c.b16 %v155, %v154
  %v166 = vpack.c.b16 %v157, %v156
  %v167 = vpack.c.b16 %v159, %v158
  %176 = vmatprep.subr.bf16.mxu0 0
  %177 = vmatpush1.bf16.msra.mxu0 %v160
  %178 = vmatprep.subr.bf16.mxu0 0
  %179 = vmatpush1.bf16.msra.mxu0 %v161
  %180 = vmatprep.subr.bf16.mxu0 0
  %181 = vmatpush1.bf16.msra.mxu0 %v162
  %182 = vmatprep.subr.bf16.mxu0 0
  %183 = vmatpush1.bf16.msra.mxu0 %v163
  %184 = vmatprep.subr.bf16.mxu0 0
  %185 = vmatpush1.bf16.msra.mxu0 %v164
  %186 = vmatprep.subr.bf16.mxu0 0
  %187 = vmatpush1.bf16.msra.mxu0 %v165
  %188 = vmatprep.subr.bf16.mxu0 0
  %189 = vmatpush1.bf16.msra.mxu0 %v166
  %190 = vmatprep.subr.bf16.mxu0 0
  %191 = vmatpush1.bf16.msra.mxu0 %v167
  %192 = vmatprep.subr.bf16.mxu0 0
  %193 = vmatpush1.bf16.msra.mxu0 0
  %194 = vmatprep.subr.bf16.mxu0 0
  %195 = vmatpush1.bf16.msra.mxu0 0
  %196 = vmatprep.subr.bf16.mxu0 0
  %197 = vmatpush1.bf16.msra.mxu0 0
  %198 = vmatprep.subr.bf16.mxu0 0
  %199 = vmatpush1.bf16.msra.mxu0 0
  %200 = vmatprep.subr.bf16.mxu0 0
  %201 = vmatpush1.bf16.msra.mxu0 0
  %202 = vmatprep.subr.bf16.mxu0 0
  %203 = vmatpush1.bf16.msra.mxu0 0
  %204 = vmatprep.subr.bf16.mxu0 0
  %205 = vmatpush1.bf16.msra.mxu0 0
  %206 = vmatprep.subr.bf16.mxu0 0
  %207 = vmatpush1.bf16.msra.mxu0 0
  %208 = vmatprep.mubr.bf16.mxu0 0
  %209 = vmatmul.mubr.bf16.gmra.mrb[0].mxu0 %v112
  %v210 = vpop.f32.mrb[0].mxu0
  %v211 = vadd.f32 0.0, %v210
  %v212 = vpop.f32.mrb[0].mxu0
  %v213 = vpop.f32.mrb[0].mxu0
  %v214 = vadd.f32 0.0, %v213
  %v215 = vpop.f32.mrb[0].mxu0
  %216 = vmatprep.mubr.bf16.mxu0 0
  %217 = vmatmul.mubr.bf16.gmra.mrb[0].mxu0 %v113
  %v218 = vpop.f32.mrb[0].mxu0
  %v219 = vadd.f32 0.0, %v218
  %v220 = vpop.f32.mrb[0].mxu0
  %v221 = vpop.f32.mrb[0].mxu0
  %v222 = vadd.f32 0.0, %v221
  %v223 = vpop.f32.mrb[0].mxu0
  %224 = vmatprep.mubr.bf16.mxu0 0
  %225 = vmatmul.mubr.bf16.gmra.mrb[0].mxu0 %v114
  %v226 = vpop.f32.mrb[0].mxu0
  %v227 = vadd.f32 0.0, %v226
  %v228 = vpop.f32.mrb[0].mxu0
  %v229 = vpop.f32.mrb[0].mxu0
  %v230 = vadd.f32 0.0, %v229
  %v231 = vpop.f32.mrb[0].mxu0
  %232 = vmatprep.mubr.bf16.mxu0 0
  %233 = vmatmul.mubr.bf16.gmra.mrb[0].mxu0 %v115
  %v234 = vpop.f32.mrb[0].mxu0
  %v235 = vadd.f32 0.0, %v234
  %v236 = vpop.f32.mrb[0].mxu0
  %v237 = vpop.f32.mrb[0].mxu0
  %v238 = vadd.f32 0.0, %v237
  %v239 = vpop.f32.mrb[0].mxu0
  %240 = vmatprep.mubr.bf16.mxu0 0
  %241 = vmatmul.mubr.bf16.gmra.mrb[0].mxu0 %v116
  %v242 = vpop.f32.mrb[0].mxu0
  %v243 = vadd.f32 0.0, %v242
  %v244 = vpop.f32.mrb[0].mxu0
  %v245 = vpop.f32.mrb[0].mxu0
  %v246 = vadd.f32 0.0, %v245
  %v247 = vpop.f32.mrb[0].mxu0
  %248 = vmatprep.mubr.bf16.mxu0 0
  %249 = vmatmul.mubr.bf16.gmra.mrb[0].mxu0 %v117
  %v250 = vpop.f32.mrb[0].mxu0
  %v251 = vadd.f32 0.0, %v250
  %v252 = vpop.f32.mrb[0].mxu0
  %v253 = vpop.f32.mrb[0].mxu0
  %v254 = vadd.f32 0.0, %v253
  %v255 = vpop.f32.mrb[0].mxu0
  %256 = vmatprep.mubr.bf16.mxu0 0
  %257 = vmatmul.mubr.bf16.gmra.mrb[0].mxu0 %v118
  %v258 = vpop.f32.mrb[0].mxu0
  %v259 = vadd.f32 0.0, %v258
  %v260 = vpop.f32.mrb[0].mxu0
  %v261 = vpop.f32.mrb[0].mxu0
  %v262 = vadd.f32 0.0, %v261
  %v263 = vpop.f32.mrb[0].mxu0
  %264 = vmatprep.mubr.bf16.mxu0 0
  %265 = vmatmul.mubr.bf16.gmra.mrb[0].mxu0 %v119
  %v266 = vpop.f32.mrb[0].mxu0
  %v267 = vadd.f32 0.0, %v266
  %v268 = vpop.f32.mrb[0].mxu0
  %v269 = vpop.f32.mrb[0].mxu0
  %v270 = vadd.f32 0.0, %v269
  %v271 = vpop.f32.mrb[0].mxu0
  %272 = vdwg.mxu0
  %v273 = vadd.f32 %v32, %v211
  %v274 = vadd.f32 %v33, %v214
  %v275 = vadd.f32 %v34, %v219
  %v276 = vadd.f32 %v35, %v222
  %v277 = vadd.f32 %v36, %v227
  %v278 = vadd.f32 %v37, %v230
  %v279 = vadd.f32 %v38, %v235
  %v280 = vadd.f32 %v39, %v238
  %v281 = vadd.f32 %v40, %v243
  %v282 = vadd.f32 %v41, %v246
  %v283 = vadd.f32 %v42, %v251
  %v284 = vadd.f32 %v43, %v254
  %v285 = vadd.f32 %v44, %v259
  %v286 = vadd.f32 %v45, %v262
  %v287 = vadd.f32 %v46, %v267
  %v288 = vadd.f32 %v47, %v270
  %289 = vst [vmem:[#allocation2] sm:$0xff] %v273
  %290 = vst [vmem:[#allocation2 + $0x8] sm:$0xff] %v274
  %291 = vst [vmem:[#allocation2 + $0x10] sm:$0xff] %v275
  %292 = vst [vmem:[#allocation2 + $0x18] sm:$0xff] %v276
  %293 = vst [vmem:[#allocation2 + $0x20] sm:$0xff] %v277
  %294 = vst [vmem:[#allocation2 + $0x28] sm:$0xff] %v278
  %295 = vst [vmem:[#allocation2 + $0x30] sm:$0xff] %v279
  %296 = vst [vmem:[#allocation2 + $0x38] sm:$0xff] %v280
  %297 = vst [vmem:[#allocation2 + $0x40] sm:$0xff] %v281
  %298 = vst [vmem:[#allocation2 + $0x48] sm:$0xff] %v282
  %299 = vst [vmem:[#allocation2 + $0x50] sm:$0xff] %v283
  %300 = vst [vmem:[#allocation2 + $0x58] sm:$0xff] %v284
  %301 = vst [vmem:[#allocation2 + $0x60] sm:$0xff] %v285
  %302 = vst [vmem:[#allocation2 + $0x68] sm:$0xff] %v286
  %303 = vst [vmem:[#allocation2 + $0x70] sm:$0xff] %v287
  %304 = vst [vmem:[#allocation2 + $0x78] sm:$0xff] %v288
  // Predicated region
  $region14: #{graph_convolution.2} parent=0 // pred_check
    %p305 = pneg %p12
  $region15: #{graph_convolution.2} parent=0 // pred_check_branch
    %307 = sbr.rel (%p305) target = $region17
  $region16: #{graph_convolution.2} parent=0 // pred_region
    %v308 = vld [vmem:[#allocation2] sm:$0xff]
    %v309 = vld [vmem:[#allocation2 + $0x8] sm:$0xff]
    %v310 = vld [vmem:[#allocation2 + $0x10] sm:$0xff]
    %v311 = vld [vmem:[#allocation2 + $0x18] sm:$0xff]
    %v312 = vld [vmem:[#allocation2 + $0x20] sm:$0xff]
    %v313 = vld [vmem:[#allocation2 + $0x28] sm:$0xff]
    %v314 = vld [vmem:[#allocation2 + $0x30] sm:$0xff]
    %v315 = vld [vmem:[#allocation2 + $0x38] sm:$0xff]
    %v316 = vld [vmem:[#allocation2 + $0x40] sm:$0xff]
    %v317 = vld [vmem:[#allocation2 + $0x48] sm:$0xff]
    %v318 = vld [vmem:[#allocation2 + $0x50] sm:$0xff]
    %v319 = vld [vmem:[#allocation2 + $0x58] sm:$0xff]
    %v320 = vld [vmem:[#allocation2 + $0x60] sm:$0xff]
    %v321 = vld [vmem:[#allocation2 + $0x68] sm:$0xff]
    %v322 = vld [vmem:[#allocation2 + $0x70] sm:$0xff]
    %v323 = vld [vmem:[#allocation2 + $0x78] sm:$0xff]
    %v324 = vpack.c.bf16 %v309, %v308
    %v325 = vpack.c.bf16 %v311, %v310
    %v326 = vpack.c.bf16 %v313, %v312
    %v327 = vpack.c.bf16 %v315, %v314
    %v328 = vpack.c.bf16 %v317, %v316
    %v329 = vpack.c.bf16 %v319, %v318
    %v330 = vpack.c.bf16 %v321, %v320
    %v331 = vpack.c.bf16 %v323, %v322
    %v340 = vunpack.c.l.b16 %v324
    %v341 = vunpack.c.h.b16 %v324
    %v342 = vunpack.c.l.b16 %v325
    %v343 = vunpack.c.h.b16 %v325
    %v344 = vunpack.c.l.b16 %v326
    %v345 = vunpack.c.h.b16 %v326
    %v346 = vunpack.c.l.b16 %v327
    %v347 = vunpack.c.h.b16 %v327
    %v348 = vunpack.c.l.b16 %v328
    %v349 = vunpack.c.h.b16 %v328
    %v350 = vunpack.c.l.b16 %v329
    %v351 = vunpack.c.h.b16 %v329
    %v352 = vunpack.c.l.b16 %v330
    %v353 = vunpack.c.h.b16 %v330
    %v354 = vunpack.c.l.b16 %v331
    %v355 = vunpack.c.h.b16 %v331
    %v356 = vpack.c.b16 %v340, %v340
    %v357 = vpack.c.b16 %v341, %v341
    %v358 = vpack.c.b16 %v342, %v342
    %v359 = vpack.c.b16 %v343, %v343
    %v360 = vpack.c.b16 %v344, %v344
    %v361 = vpack.c.b16 %v345, %v345
    %v362 = vpack.c.b16 %v346, %v346
    %v363 = vpack.c.b16 %v347, %v347
    %v364 = vpack.c.b16 %v348, %v348
    %v365 = vpack.c.b16 %v349, %v349
    %v366 = vpack.c.b16 %v350, %v350
    %v367 = vpack.c.b16 %v351, %v351
    %v368 = vpack.c.b16 %v352, %v352
    %v369 = vpack.c.b16 %v353, %v353
    %v370 = vpack.c.b16 %v354, %v354
    %v371 = vpack.c.b16 %v355, %v355
    %388 = vst [vmem:[%s2] sm:$0xf] %v356
    %389 = vst [vmem:[%s2 + $0x4] sm:$0xf] %v357
    %390 = vst [vmem:[%s2 + $0x8] sm:$0xf] %v358
    %391 = vst [vmem:[%s2 + $0xc] sm:$0xf] %v359
    %392 = vst [vmem:[%s2 + $0x10] sm:$0xf] %v360
    %393 = vst [vmem:[%s2 + $0x14] sm:$0xf] %v361
    %394 = vst [vmem:[%s2 + $0x18] sm:$0xf] %v362
    %395 = vst [vmem:[%s2 + $0x1c] sm:$0xf] %v363
    %396 = vst [vmem:[%s2 + $0x20] sm:$0xf] %v364
    %397 = vst [vmem:[%s2 + $0x24] sm:$0xf] %v365
    %398 = vst [vmem:[%s2 + $0x28] sm:$0xf] %v366
    %399 = vst [vmem:[%s2 + $0x2c] sm:$0xf] %v367
    %400 = vst [vmem:[%s2 + $0x30] sm:$0xf] %v368
    %401 = vst [vmem:[%s2 + $0x34] sm:$0xf] %v369
    %402 = vst [vmem:[%s2 + $0x38] sm:$0xf] %v370
    %403 = vst [vmem:[%s2 + $0x3c] sm:$0xf] %v371
  $region17: #{graph_convolution.2} parent=0 // pred_fallthru
    _
  // Predicated region
  $region18: #{graph_convolution.2} parent=0 // pred_check
    _
  $region19: #{graph_convolution.2} parent=0 // pred_check_branch
    %405 = sbr.rel (0) target = $region21
  $region20: #{graph_convolution.2} parent=0 // pred_region
    _
  $region21: #{graph_convolution.2} parent=0 // pred_fallthru
    _
  // Predicated region
  $region22: #{graph_convolution.2} parent=0 // pred_check
    _
  $region23: #{graph_convolution.2} parent=0 // pred_check_branch
    %407 = sbr.rel (0) target = $region25
  $region24: #{graph_convolution.2} parent=0 // pred_region
    _
  $region25: #{graph_convolution.2} parent=0 // pred_fallthru
    _

</llo_original>
